<compile_context>
chip_gen: v6e
topology: v6e:2x2x1
jax: 0.10.0
libtpu: 0.0.40
codegen_flags: <defaults>
</compile_context>

<pallas_src>
import jax
import jax.numpy as jnp
from jax import lax
from jax.experimental import pallas as pl
from jax.experimental.pallas import tpu as pltpu

_LANE = 128
_TF_CAP = 2048       # feature-tile cap (lane-dense, multiple of 128)
_TB_CAP = 512        # batch-tile cap
_VPU_G_MAX = 16      # use VPU broadcast-accumulate for G <= this
_MIN_STEPS = 8       # target minimum grid steps (pipelining + megacore)


def _round_up(x, m):
    return ((x + m - 1) // m) * m


def _sublane(dtype):
    # 8 rows/vreg for 4-byte dtypes, 16 for bf16, 32 for int8/fp8.
    return max(8, 32 // jnp.dtype(dtype).itemsize)


def _vmem_budget():
    """(double-buffered tile budget, physical VMEM capacity) in bytes.
    ~3/8 of physical VMEM: 48 MiB on 128-MiB parts (v5e/v6e), 24 MiB on v7x."""
    try:
        cap = int(pltpu.get_tpu_info().vmem_capacity_bytes)
    except Exception:
        cap = 64 << 20                      # conservative (v7x) fallback
    return max(16 << 20, (cap * 3) // 8), cap


def _pick_batch_tile(B, bytes_per_row, budget, sublane, min_steps):
    """Largest batch tile that (a) fits the VMEM budget, (b) leaves >= min_steps
    grid steps when B is large enough, (c) is sublane-aligned (or full extent)."""
    rows = max(sublane, budget // max(bytes_per_row, 1))
    tb = min(B, _TB_CAP, rows)
    if min_steps > 1 and B >= min_steps * sublane:
        tb = min(tb, _round_up(pl.cdiv(B, min_steps), sublane))
    if tb >= B:
        return B                            # full extent: always layout-legal
    return max(sublane, (tb // sublane) * sublane)


def _feat_mask(m, g, G):
    """(TB,G) x (G,TF) feature mask.  Small G -> exact-f32 VPU broadcast-
    accumulate (VALU slots are idle in this mem-bound kernel; the MXU would pad
    K=G to 128/256).  Large G -> MXU matmul at HIGHEST precision (needed so the
    f32 operands are not rounded to bf16)."""
    if G <= _VPU_G_MAX:
        acc = m[:, 0:1] * g[0:1, :]
        for gi in range(1, G):
            acc = acc + m[:, gi:gi + 1] * g[gi:gi + 1, :]
        return acc
    return jnp.dot(m, g, preferred_element_type=jnp.float32,
                   precision=lax.Precision.HIGHEST)


def _make_single_tile_kernel(F, G, append):
    """All features in one block: x (TB,F), resident group matrix (G,F),
    output (TB, F[+G]).  Append fused as a second (tiny) store."""
    def kernel(x_ref, m_ref, g_ref, o_ref):
        m = m_ref[...]
        fm = _feat_mask(m, g_ref[...], G)
        masked = (x_ref[...] * fm).astype(o_ref.dtype)
        if append:
            o_ref[:, :F] = masked
            o_ref[:, F:] = m.astype(o_ref.dtype)
        else:
            o_ref[...] = masked
    return kernel


def _make_feature_tiled_kernel(F, G, TF):
    """Feature-tiled variant over the augmented group matrix [gm | I_G]:
       out[:, c] = x[:, c] * (m @ gm)[:, c]   for c <  F
       out[:, c] = m[:, c - F]                for c >= F  (x acts as 1 there).
    Interior tiles skip the column mask entirely; only the tile that straddles
    F (and thus holds the appended columns / x padding) builds a (1, TF) mask."""
    def kernel(x_ref, m_ref, g_ref, o_ref):
        j = pl.program_id(0)                # feature-tile index (outer axis)
        fm = _feat_mask(m_ref[...], g_ref[...], G)

        @pl.when((j + 1) * TF <= F)         # interior tile: plain multiply
        def _():
            o_ref[...] = (x_ref[...] * fm).astype(o_ref.dtype)

        @pl.when((j + 1) * TF > F)          # straddle / append tile
        def _():
            cols = j * TF + lax.broadcasted_iota(jnp.int32, (1, TF), 1)
            x_eff = jnp.where(cols < F, x_ref[...], jnp.ones((), x_ref.dtype))
            o_ref[...] = (x_eff * fm).astype(o_ref.dtype)
    return kernel


def mask_layer_grouped(x, m, group_matrix, append=True):
    """Pallas TPU forward of MaskLayerGrouped.

    x: (B, F) float, m: (B, G) float, group_matrix: (G, F) binary with each
    column summing to 1.  Returns (B, F+G) if append else (B, F), dtype of x.
    """
    B, F = x.shape
    G = m.shape[1]
    assert group_matrix.shape == (G, F)

    out_dtype = x.dtype
    isz = jnp.dtype(out_dtype).itemsize
    m_isz = jnp.dtype(m.dtype).itemsize
    sub = _sublane(out_dtype)
    gm = group_matrix.astype(jnp.float32)
    Fo = F + G if append else F

    budget, vmem_cap = _vmem_budget()

    if Fo <= _TF_CAP:
        # --- single feature tile: full-extent feature blocks, grid over batch.
        g_arr = gm
        g_bytes = 2 * G * F * 4
        # double-buffered x/m/out rows + ~2 f32 temporaries per element
        bytes_per_row = 2 * (F * isz + G * m_isz + Fo * isz) + 2 * F * 4
        TB = _pick_batch_tile(B, bytes_per_row, max(budget - g_bytes, 4 << 20),
                              sub, min_steps=_MIN_STEPS)
        grid = (pl.cdiv(B, TB),)
        kernel = _make_single_tile_kernel(F, G, append)
        in_specs = [
            pl.BlockSpec((TB, F), lambda i: (i, 0)),
            pl.BlockSpec((TB, G), lambda i: (i, 0)),
            pl.BlockSpec((G, F), lambda i: (0, 0)),       # resident group matrix
        ]
        out_specs = pl.BlockSpec((TB, Fo), lambda i: (i, 0))
        dims = ("parallel",)
    else:
        # --- large feature dim: lane-dense feature tiling; append fused via the
        # augmented group matrix [gm | I_G].  TF derived from Fo so the appended
        # G columns ride inside the last (straddle) tile.
        if append:
            g_arr = jnp.concatenate([gm, jnp.eye(G, dtype=jnp.float32)], axis=1)
        else:
            g_arr = gm
        n_f = pl.cdiv(Fo, _TF_CAP)
        TF = _round_up(pl.cdiv(Fo, n_f), _LANE)
        n_f = pl.cdiv(Fo, TF)
        nxf = pl.cdiv(F, TF)                              # valid x feature blocks
        g_bytes = 2 * G * TF * 4
        # double-buffered x/out/m rows + ~3 f32 temporaries per element
        bytes_per_row = 2 * (2 * TF * isz + G * m_isz) + 3 * TF * 4
        TB = _pick_batch_tile(B, bytes_per_row, max(budget - g_bytes, 4 << 20),
                              sub, min_steps=max(1, pl.cdiv(_MIN_STEPS, n_f)))
        n_b = pl.cdiv(B, TB)
        # Feature axis OUTER, batch INNER: the (G, TF) group-matrix block index
        # is constant across the inner loop, so it stays resident in VMEM.
        grid = (n_f, n_b)
        kernel = _make_feature_tiled_kernel(F, G, TF)
        in_specs = [
            # Clamp so a (rare) pure-append tile re-reads the last valid x
            # block; the straddle-tile mask overwrites those lanes with 1.
            pl.BlockSpec((TB, TF), lambda j, i: (i, jnp.minimum(j, nxf - 1))),
            pl.BlockSpec((TB, G), lambda j, i: (i, 0)),
            pl.BlockSpec((G, TF), lambda j, i: (0, j)),   # resident along batch
        ]
        out_specs = pl.BlockSpec((TB, TF), lambda j, i: (i, j))
        dims = ("parallel", "parallel")

    cost = pl.CostEstimate(
        flops=2 * B * G * Fo + B * Fo,
        transcendentals=0,
        bytes_accessed=(B * F + B * Fo) * isz + B * G * m_isz
        + int(g_arr.size) * 4,
    )

    vmem_limit = int(min(vmem_cap - (4 << 20), budget + (16 << 20)))

    return pl.pallas_call(
        kernel,
        out_shape=jax.ShapeDtypeStruct((B, Fo), out_dtype),
        grid=grid,
        in_specs=in_specs,
        out_specs=out_specs,
        compiler_params=pltpu.CompilerParams(
            dimension_semantics=dims,
            vmem_limit_bytes=vmem_limit,
        ),
        cost_estimate=cost,
    )(x, m, g_arr)


def make_group_matrix(num_groups, num_features):
    """Deterministic group assignment: feature f belongs to group f % num_groups.
    Satisfies the module's asserts: binary entries, each column sums to 1."""
    group_id = jnp.arange(num_features) % num_groups
    gm = (group_id[None, :] == jnp.arange(num_groups)[:, None])
    return gm.astype(jnp.float32)


def _reference(x, m, group_matrix, append):
    out = x * jnp.matmul(m, group_matrix, precision=lax.Precision.HIGHEST)
    if append:
        out = jnp.concatenate([out, m.astype(out.dtype)], axis=1)
    return out


def _check(B, G, F, append, key):
    kx, km = jax.random.split(key)
    x = jax.random.normal(kx, (B, F), dtype=jnp.float32)
    m = jax.random.uniform(km, (B, G), dtype=jnp.float32)
    gm = make_group_matrix(G, F)
    out = jax.block_until_ready(mask_layer_grouped(x, m, gm, append=append))
    ref = _reference(x, m, gm, append)
    assert out.shape == ref.shape, (out.shape, ref.shape)
    assert jnp.allclose(out, ref, atol=1e-5, rtol=1e-5), \
        float(jnp.max(jnp.abs(out - ref)))


if __name__ == "__main__":
    key = jax.random.PRNGKey(0)
    keys = jax.random.split(key, 5)
    # Small tabular shapes (single-feature-tile path), with and without append.
    _check(B=8, G=4, F=32, append=True, key=keys[0])
    _check(B=8, G=4, F=32, append=False, key=keys[1])
    # Mid-size batch: exercises the multi-step (>=8) batch grid.
    _check(B=256, G=4, F=256, append=True, key=keys[2])
    # Wide-feature shapes exercising the lane-dense feature-tiled path.
    _check(B=16, G=8, F=4096, append=True, key=keys[3])   # append rides the last tile
    _check(B=16, G=8, F=4100, append=True, key=keys[4])   # partial boundary block
    print("KERNEL_OK")
</pallas_src>

<mosaic_0001>
module attributes {stable_mosaic.version = 11 : i64} {
  func.func @kernel(%arg0: i32, %arg1: memref<8x32xf32, #tpu.memory_space<vmem>>, %arg2: memref<8x4xf32, #tpu.memory_space<vmem>>, %arg3: memref<4x32xf32, #tpu.memory_space<vmem>>, %arg4: memref<8x36xf32, #tpu.memory_space<vmem>>) attributes {dimension_semantics = [#tpu.dimension_semantics<parallel>], iteration_bounds = array<i64: 1>, scalar_prefetch = 0 : i64, scratch_operands = 0 : i64, tpu.core_type = #tpu.core_type<tc>, window_params = [{transform_indices = @transform_0, window_bounds = array<i64: 8, 32>}, {transform_indices = @transform_1, window_bounds = array<i64: 8, 4>}, {pipeline_mode = #tpu.pipeline_mode<synchronous>, transform_indices = @transform_2, window_bounds = array<i64: 4, 32>}, {transform_indices = @transform_3, window_bounds = array<i64: 8, 36>}]} {
    %c0 = arith.constant 0 : index
    %c0_0 = arith.constant 0 : index
    %0 = vector.load %arg2[%c0, %c0_0] : memref<8x4xf32, #tpu.memory_space<vmem>>, vector<8x4xf32>
    %c0_1 = arith.constant 0 : index
    %c0_2 = arith.constant 0 : index
    %1 = vector.load %arg3[%c0_1, %c0_2] : memref<4x32xf32, #tpu.memory_space<vmem>>, vector<4x32xf32>
    %2 = vector.extract_strided_slice %0 {offsets = [0, 0], sizes = [8, 1], strides = [1, 1]} : vector<8x4xf32> to vector<8x1xf32>
    %3 = vector.extract_strided_slice %1 {offsets = [0, 0], sizes = [1, 32], strides = [1, 1]} : vector<4x32xf32> to vector<1x32xf32>
    %4 = vector.broadcast %2 : vector<8x1xf32> to vector<8x32xf32>
    %5 = vector.broadcast %3 : vector<1x32xf32> to vector<8x32xf32>
    %6 = arith.mulf %4, %5 : vector<8x32xf32>
    %7 = vector.extract_strided_slice %0 {offsets = [0, 1], sizes = [8, 1], strides = [1, 1]} : vector<8x4xf32> to vector<8x1xf32>
    %8 = vector.extract_strided_slice %1 {offsets = [1, 0], sizes = [1, 32], strides = [1, 1]} : vector<4x32xf32> to vector<1x32xf32>
    %9 = vector.broadcast %7 : vector<8x1xf32> to vector<8x32xf32>
    %10 = vector.broadcast %8 : vector<1x32xf32> to vector<8x32xf32>
    %11 = arith.mulf %9, %10 : vector<8x32xf32>
    %12 = arith.addf %6, %11 : vector<8x32xf32>
    %13 = vector.extract_strided_slice %0 {offsets = [0, 2], sizes = [8, 1], strides = [1, 1]} : vector<8x4xf32> to vector<8x1xf32>
    %14 = vector.extract_strided_slice %1 {offsets = [2, 0], sizes = [1, 32], strides = [1, 1]} : vector<4x32xf32> to vector<1x32xf32>
    %15 = vector.broadcast %13 : vector<8x1xf32> to vector<8x32xf32>
    %16 = vector.broadcast %14 : vector<1x32xf32> to vector<8x32xf32>
    %17 = arith.mulf %15, %16 : vector<8x32xf32>
    %18 = arith.addf %12, %17 : vector<8x32xf32>
    %19 = vector.extract_strided_slice %0 {offsets = [0, 3], sizes = [8, 1], strides = [1, 1]} : vector<8x4xf32> to vector<8x1xf32>
    %20 = vector.extract_strided_slice %1 {offsets = [3, 0], sizes = [1, 32], strides = [1, 1]} : vector<4x32xf32> to vector<1x32xf32>
    %21 = vector.broadcast %19 : vector<8x1xf32> to vector<8x32xf32>
    %22 = vector.broadcast %20 : vector<1x32xf32> to vector<8x32xf32>
    %23 = arith.mulf %21, %22 : vector<8x32xf32>
    %24 = arith.addf %18, %23 : vector<8x32xf32>
    %c0_3 = arith.constant 0 : index
    %c0_4 = arith.constant 0 : index
    %25 = vector.load %arg1[%c0_3, %c0_4] : memref<8x32xf32, #tpu.memory_space<vmem>>, vector<8x32xf32>
    %26 = arith.mulf %25, %24 : vector<8x32xf32>
    %c0_5 = arith.constant 0 : index
    %c0_6 = arith.constant 0 : index
    %27 = vector.load %arg4[%c0_5, %c0_6] : memref<8x36xf32, #tpu.memory_space<vmem>>, vector<8x32xf32>
    tpu.vector_store %arg4[%c0_5, %c0_6], %26 {strides = array<i32>} : memref<8x36xf32, #tpu.memory_space<vmem>>, vector<8x32xf32>,
    %c0_7 = arith.constant 0 : index
    %c32 = arith.constant 32 : index
    %28 = vector.load %arg4[%c0_7, %c32] : memref<8x36xf32, #tpu.memory_space<vmem>>, vector<8x4xf32>
    tpu.vector_store %arg4[%c0_7, %c32], %0 {strides = array<i32>} : memref<8x36xf32, #tpu.memory_space<vmem>>, vector<8x4xf32>,
    return
  }
  func.func @transform_0(%arg0: i32) -> (i32, i32) {
    %c0_i32 = arith.constant 0 : i32
    %c0_i32_0 = arith.constant 0 : i32
    return %arg0, %c0_i32 : i32, i32
  }
  func.func @transform_1(%arg0: i32) -> (i32, i32) {
    %c0_i32 = arith.constant 0 : i32
    %c0_i32_0 = arith.constant 0 : i32
    return %arg0, %c0_i32 : i32, i32
  }
  func.func @transform_2(%arg0: i32) -> (i32, i32) {
    %c0_i32 = arith.constant 0 : i32
    %c0_i32_0 = arith.constant 0 : i32
    %c0_i32_1 = arith.constant 0 : i32
    return %c0_i32, %c0_i32_0 : i32, i32
  }
  func.func @transform_3(%arg0: i32) -> (i32, i32) {
    %c0_i32 = arith.constant 0 : i32
    %c0_i32_0 = arith.constant 0 : i32
    return %arg0, %c0_i32 : i32, i32
  }
}

</mosaic_0001>

<llo_original>
// kernel: tpu_custom_call.1
$region0: #{tpu_custom_call.1}
  #allocation0 [shape = 'u32[]', space=smem, size = 0x4, offset = 0x4, fixed_abs, tag = 'smem constant byte address 0x4 - core index']
  #allocation1 [shape = 'u32[144,128]{1,0:T(1,128)}', space=vmem, size = 0x12000, scoped, tag = 'internal scratch']
  %s0 = inlined_call_operand.vmem [shape: f32[8,32], index: 0, kind: input, shape index: {}]
  %s1 = inlined_call_operand.vmem [shape: f32[8,4], index: 1, kind: input, shape index: {}]
  %s2 = inlined_call_operand.vmem [shape: f32[4,32], index: 2, kind: input, shape index: {}]
  %s3 = inlined_call_operand.hbm [shape: f32[8,36], index: 3, kind: output, shape index: {}]
  %s4 = sld [smem:[#allocation0]]
  $region22: #{tpu_custom_call.1} parent=0
    _
  %s6 = ssub.s32 1, %s4
  %s7 = scalar_select 0, %s6, %s4
  $region1: #{tpu_custom_call.1} parent=0
    #allocation2 [shape = 'u8[4096]{0}', space=vmem, size = 0x1000, scoped, tag = 'output window, operand 0, single buffered']
    #allocation3 [shape = 's32[1]{0}', space=sflag, size = 0x4, scoped, tag = 'scoped memory for tpu_custom_call.1']
    %8 = vsyncpa [#allocation3], 0
    // Predicated region
    $region2: #{tpu_custom_call.1} parent=1 // pred_check
      _
    $region3: #{tpu_custom_call.1} parent=1 // pred_check_branch
      %10 = sbr.rel (0) target = $region5
    $region4: #{tpu_custom_call.1} parent=1 // pred_region
      _
    $region5: #{tpu_custom_call.1} parent=1 // pred_fallthru
      _
    // Predicated region
    $region6: #{tpu_custom_call.1} parent=1 // pred_check
      _
    $region7: #{tpu_custom_call.1} parent=1 // pred_check_branch
      %12 = sbr.rel (0) target = $region9
    $region8: #{tpu_custom_call.1} parent=1 // pred_region
      _
    $region9: #{tpu_custom_call.1} parent=1 // pred_fallthru
      _
    // Predicated region
    $region10: #{tpu_custom_call.1} parent=1 // pred_check
      _
    $region11: #{tpu_custom_call.1} parent=1 // pred_check_branch
      %14 = sbr.rel (0) target = $region13
    $region12: #{tpu_custom_call.1} parent=1 // pred_region
      _
    $region13: #{tpu_custom_call.1} parent=1 // pred_fallthru
      _
    %v15 = vld [vmem:[%s1] sm:$0xff]
    %v16 = vld [vmem:[%s2] sm:$0xf]
    %18 = vset.pattern.permute.xlu0 0
    %19 = vperm.xlu0 %18, %v15
    %v20 = vpop.permute.xlu0 %19
    %v22 = vlaneseq
    %v23 = vshrl.u32 %v22, 7
    %v24 = vsub.s32 0, %v23
    %v25 = vrot.slane %v16, %v24
    %v26 = vmul.f32 %v20, %v25
    %27 = vset.pattern.permute.xlu0 1
    %28 = vperm.xlu0 %27, %v15
    %v29 = vpop.permute.xlu0 %28
    %v31 = vlaneseq
    %v32 = vshrl.u32 %v31, 7
    %v33 = vsub.s32 1, %v32
    %v34 = vrot.slane %v16, %v33
    %v35 = vmul.f32 %v29, %v34
    %v36 = vadd.f32 %v26, %v35
    %37 = vset.pattern.permute.xlu0 2
    %38 = vperm.xlu0 %37, %v15
    %v39 = vpop.permute.xlu0 %38
    %v41 = vlaneseq
    %v42 = vshrl.u32 %v41, 7
    %v43 = vsub.s32 2, %v42
    %v44 = vrot.slane %v16, %v43
    %v45 = vmul.f32 %v39, %v44
    %v46 = vadd.f32 %v36, %v45
    %47 = vset.pattern.permute.xlu0 3
    %48 = vperm.xlu0 %47, %v15
    %v49 = vpop.permute.xlu0 %48
    %v51 = vlaneseq
    %v52 = vshrl.u32 %v51, 7
    %v53 = vsub.s32 3, %v52
    %v54 = vrot.slane %v16, %v53
    %v55 = vmul.f32 %v49, %v54
    %v56 = vadd.f32 %v46, %v55
    %v57 = vld [vmem:[%s0] sm:$0xff]
    %v58 = vmul.f32 %v57, %v56
    %vm59 = vcmask 261120
    %60 = vst.msk [vmem:[#allocation2] sm:$0xff] %vm59, %v58
    %61 = vrot.lane.b32.xlu0 %v15, 32
    %v62 = vpop.permute.xlu0 %61
    %vm64 = vcmask 294144
    %65 = vst.msk [vmem:[#allocation2] sm:$0xff] %vm64, %v62
    // Predicated region
    $region14: #{tpu_custom_call.1} parent=1 // pred_check
      _
    $region15: #{tpu_custom_call.1} parent=1 // pred_check_branch
      %67 = sbr.rel (0) target = $region17
    $region16: #{tpu_custom_call.1} parent=1 // pred_region
      %s69 = ssub.s32 128, 128
      %70 = vsyncadd [#allocation3], %s69
      %s72 = sshll.u32 [#allocation2], 4
      %s73 = int_to_ptr.vmem [resolvable:$true] %s72
      %75 = dma.vmem_to_hbm [thread:$0]  %s73, 128, %s3, [#allocation3]
    $region17: #{tpu_custom_call.1} parent=1 // pred_fallthru
      _
    // Predicated region
    $region18: #{tpu_custom_call.1} parent=1 // pred_check
      _
    $region19: #{tpu_custom_call.1} parent=1 // pred_check_branch
      %77 = sbr.rel (0) target = $region21
    $region20: #{tpu_custom_call.1} parent=1 // pred_region
      %78 = dma.done [#allocation3], 128
    $region21: #{tpu_custom_call.1} parent=1 // pred_fallthru
      _
    %79 = vsyncpa [#allocation3], 1

</llo_original>
